<compile_context>
chip_gen: v7x
topology: tpu7x:2x2x1
jax: 0.10.0
libtpu: 0.0.40
codegen_flags: <defaults>
</compile_context>

<pallas_src>
import jax
import jax.numpy as jnp
import numpy as np
from jax import lax
from jax.experimental import pallas as pl
from jax.experimental.pallas import tpu as pltpu

# Set to jnp.bfloat16 on v6e/v7x for higher MXU throughput (accumulation stays
# f32 via preferred_element_type).  Default f32 keeps exact parity with the
# PyTorch module and the tight test tolerance below.
MATMUL_DTYPE = jnp.float32

_PAD = 128  # lane-aligned halo in the flat-padded scratch buffers (needs W+1 <= _PAD)


def _make_fused_block_kernel(H, W, cin, cout, matmul_dtype):
    HW = H * W
    assert W + 1 <= _PAD, "image width too large for the fixed lane-aligned halo"
    LP = _PAD + HW + _PAD  # padded flat spatial length of the scratch buffers

    def conv3x3(src_ref, w_mat, mask_m1, mask_p1, c_in):
        # src_ref: (c_in, LP) zero-padded flat activation scratch (f32)
        # w_mat:   (cout, 9*c_in)
        # returns  (cout, HW) f32 conv3x3 output via ONE K-fused MXU matmul.
        taps = []
        for kh in range(3):
            for kw in range(3):
                s0 = _PAD + (kh - 1) * W + (kw - 1)
                patch = src_ref[:, s0:s0 + HW]          # (c_in, HW)
                if kw == 0:                             # column w-1 invalid at w == 0
                    patch = patch * mask_m1
                elif kw == 2:                           # column w+1 invalid at w == W-1
                    patch = patch * mask_p1
                taps.append(patch)
        im2col = jnp.concatenate(taps, axis=0)          # (9*c_in, HW), sublane-aligned concat
        return jnp.dot(w_mat.astype(matmul_dtype),
                       im2col.astype(matmul_dtype),
                       preferred_element_type=jnp.float32)   # (cout, HW)

    def kernel(x_ref, w1_ref, s1_ref, b1_ref, w2_ref, s2_ref, b2_ref,
               mask_ref, o_ref, xpad_ref, h1pad_ref):
        mask_m1 = mask_ref[0:1, :]                      # (1, HW)
        mask_p1 = mask_ref[2:3, :]
        x = x_ref[...].astype(jnp.float32)              # (cin, HW)

        # Zero only the halo pads (two lane-aligned 128-wide slabs per buffer).
        # Re-done every grid step: scratch is per-core under megacore sharding,
        # so "zero only on program_id==0" would leave the 2nd core's pads dirty.
        xpad_ref[:, 0:_PAD] = jnp.zeros((cin, _PAD), jnp.float32)
        xpad_ref[:, _PAD + HW:_PAD + HW + _PAD] = jnp.zeros((cin, _PAD), jnp.float32)
        h1pad_ref[:, 0:_PAD] = jnp.zeros((cout, _PAD), jnp.float32)
        h1pad_ref[:, _PAD + HW:_PAD + HW + _PAD] = jnp.zeros((cout, _PAD), jnp.float32)

        # stage x into the zero-padded flat buffer (row halo = zeros in the pad)
        xpad_ref[:, _PAD:_PAD + HW] = x                 # lane-aligned store (start = 128)

        # conv1 -> folded bn1 -> relu
        y1 = conv3x3(xpad_ref, w1_ref[...], mask_m1, mask_p1, cin)
        h1 = jnp.maximum(y1 * s1_ref[...] + b1_ref[...], 0.0)   # (cout, HW)

        # re-pad h1 in VMEM (never leaves the chip)
        h1pad_ref[:, _PAD:_PAD + HW] = h1

        # conv2 -> folded bn2 -> relu
        y2 = conv3x3(h1pad_ref, w2_ref[...], mask_m1, mask_p1, cout)
        h2 = jnp.maximum(y2 * s2_ref[...] + b2_ref[...], 0.0)

        # identity residual add + final relu (same_shape=True)
        o_ref[...] = jnp.maximum(h2 + x, 0.0).astype(o_ref.dtype)

    return kernel


def fold_bn(gamma, beta, mean, var, eps=1e-5):
    scale = gamma / jnp.sqrt(var + eps)
    bias = beta - mean * scale
    return scale.reshape(-1, 1), bias.reshape(-1, 1)     # (C, 1): per-sublane, lane-broadcast


def _conv_weight_to_matmul(w_oihw):
    # PyTorch (cout, cin, 3, 3) -> (cout, 9*cin) with K ordered (kh, kw, cin)
    cout, cin = w_oihw.shape[0], w_oihw.shape[1]
    return jnp.transpose(w_oihw, (2, 3, 1, 0)).reshape(9 * cin, cout).T


def _column_masks(H, W):
    # mask[j] zeroes positions whose column neighbour (dw = j-1) is outside [0, W)
    HW = H * W
    w_idx = np.arange(HW) % W
    m = np.ones((3, HW), np.float32)
    m[0, w_idx == 0] = 0.0
    m[2, w_idx == W - 1] = 0.0
    return jnp.asarray(m)


def residual_block_forward(x_nchw, params):
    """residual_block.forward for same_shape=True (stride 1, identity skip), eval-mode BN."""
    # TODO(synk): same_shape=False path (stride-2 conv1 + 1x1 conv3 projection) not implemented.
    # TODO(synk): training-mode BatchNorm batch statistics not implemented (folded running stats).
    N, C, H, W = x_nchw.shape
    HW = H * W

    w1 = _conv_weight_to_matmul(params["conv1_w"])
    w2 = _conv_weight_to_matmul(params["conv2_w"])
    s1, b1 = fold_bn(params["bn1_g"], params["bn1_b"], params["bn1_m"], params["bn1_v"])
    s2, b2 = fold_bn(params["bn2_g"], params["bn2_b"], params["bn2_m"], params["bn2_v"])
    masks = _column_masks(H, W)
    cout = w1.shape[0]

    x_flat = x_nchw.reshape(N, C, HW)      # contiguous reshape: no HBM transpose pass
    kernel = _make_fused_block_kernel(H, W, C, cout, MATMUL_DTYPE)
    LP = _PAD + HW + _PAD

    out_flat = pl.pallas_call(
        kernel,
        out_shape=jax.ShapeDtypeStruct((N, cout, HW), x_nchw.dtype),
        grid_spec=pltpu.PrefetchScalarGridSpec(
            num_scalar_prefetch=0,
            grid=(N,),
            in_specs=[
                pl.BlockSpec((None, C, HW), lambda n: (n, 0, 0)),       # x (CHW flat)
                pl.BlockSpec((cout, 9 * C), lambda n: (0, 0)),          # W1 matmul weights
                pl.BlockSpec((cout, 1), lambda n: (0, 0)),              # bn1 scale
                pl.BlockSpec((cout, 1), lambda n: (0, 0)),              # bn1 bias
                pl.BlockSpec((cout, 9 * cout), lambda n: (0, 0)),       # W2 matmul weights
                pl.BlockSpec((cout, 1), lambda n: (0, 0)),              # bn2 scale
                pl.BlockSpec((cout, 1), lambda n: (0, 0)),              # bn2 bias
                pl.BlockSpec((3, HW), lambda n: (0, 0)),                # column-halo masks
            ],
            out_specs=pl.BlockSpec((None, cout, HW), lambda n: (n, 0, 0)),
            scratch_shapes=[
                pltpu.VMEM((C, LP), jnp.float32),       # zero-padded x
                pltpu.VMEM((cout, LP), jnp.float32),    # zero-padded h1 (stays on-chip)
            ],
        ),
        compiler_params=pltpu.CompilerParams(dimension_semantics=("parallel",)),
    )(x_flat, w1, s1, b1, w2, s2, b2, masks)

    return out_flat.reshape(N, cout, H, W)


def _ref_block(x, p, eps=1e-5):
    """Pure-JAX reference of the same forward pass (matches the PyTorch module)."""
    def conv(a, w):
        return lax.conv_general_dilated(a, w, (1, 1), "SAME",
                                        dimension_numbers=("NCHW", "OIHW", "NCHW"))

    def bn(a, g, b, m, v):
        s = g / jnp.sqrt(v + eps)
        return a * s[None, :, None, None] + (b - m * s)[None, :, None, None]

    h1 = jnp.maximum(bn(conv(x, p["conv1_w"]), p["bn1_g"], p["bn1_b"], p["bn1_m"], p["bn1_v"]), 0.0)
    h2 = jnp.maximum(bn(conv(h1, p["conv2_w"]), p["bn2_g"], p["bn2_b"], p["bn2_m"], p["bn2_v"]), 0.0)
    return jnp.maximum(x + h2, 0.0)


if __name__ == "__main__":
    N, C, H, W = 2, 8, 16, 16      # same_shape=True => in_channel == out_channel
    key = jax.random.PRNGKey(0)
    ks = jax.random.split(key, 11)

    params = {
        "conv1_w": 0.1 * jax.random.normal(ks[0], (C, C, 3, 3), jnp.float32),
        "conv2_w": 0.1 * jax.random.normal(ks[1], (C, C, 3, 3), jnp.float32),
        "bn1_g": 1.0 + 0.1 * jax.random.normal(ks[2], (C,), jnp.float32),
        "bn1_b": 0.1 * jax.random.normal(ks[3], (C,), jnp.float32),
        "bn1_m": 0.1 * jax.random.normal(ks[4], (C,), jnp.float32),
        "bn1_v": jax.random.uniform(ks[5], (C,), jnp.float32, minval=0.5, maxval=1.5),
        "bn2_g": 1.0 + 0.1 * jax.random.normal(ks[6], (C,), jnp.float32),
        "bn2_b": 0.1 * jax.random.normal(ks[7], (C,), jnp.float32),
        "bn2_m": 0.1 * jax.random.normal(ks[8], (C,), jnp.float32),
        "bn2_v": jax.random.uniform(ks[9], (C,), jnp.float32, minval=0.5, maxval=1.5),
    }
    x = jax.random.normal(ks[10], (N, C, H, W), jnp.float32)

    out = jax.block_until_ready(residual_block_forward(x, params))
    ref = jax.block_until_ready(_ref_block(x, params))
    assert out.shape == (N, C, H, W) and out.dtype == jnp.float32
    tol = 1e-4 if MATMUL_DTYPE == jnp.float32 else 2e-2
    np.testing.assert_allclose(np.asarray(out), np.asarray(ref), rtol=tol, atol=tol)
    print("KERNEL_OK")
</pallas_src>

<mosaic_0001>
module attributes {stable_mosaic.version = 11 : i64} {
  func.func @kernel(%arg0: i32, %arg1: memref<1x8x256xf32, #tpu.memory_space<vmem>>, %arg2: memref<8x72xf32, #tpu.memory_space<vmem>>, %arg3: memref<8x1xf32, #tpu.memory_space<vmem>>, %arg4: memref<8x1xf32, #tpu.memory_space<vmem>>, %arg5: memref<8x72xf32, #tpu.memory_space<vmem>>, %arg6: memref<8x1xf32, #tpu.memory_space<vmem>>, %arg7: memref<8x1xf32, #tpu.memory_space<vmem>>, %arg8: memref<3x256xf32, #tpu.memory_space<vmem>>, %arg9: memref<1x8x256xf32, #tpu.memory_space<vmem>>, %arg10: memref<8x512xf32, #tpu.memory_space<vmem>>, %arg11: memref<8x512xf32, #tpu.memory_space<vmem>>) attributes {dimension_semantics = [#tpu.dimension_semantics<parallel>], iteration_bounds = array<i64: 2>, scalar_prefetch = 0 : i64, scratch_operands = 2 : i64, tpu.core_type = #tpu.core_type<tc>, window_params = [{transform_indices = @transform_0, window_bounds = array<i64: 1, 8, 256>}, {pipeline_mode = #tpu.pipeline_mode<synchronous>, transform_indices = @transform_1, window_bounds = array<i64: 8, 72>}, {pipeline_mode = #tpu.pipeline_mode<synchronous>, transform_indices = @transform_2, window_bounds = array<i64: 8, 1>}, {pipeline_mode = #tpu.pipeline_mode<synchronous>, transform_indices = @transform_3, window_bounds = array<i64: 8, 1>}, {pipeline_mode = #tpu.pipeline_mode<synchronous>, transform_indices = @transform_4, window_bounds = array<i64: 8, 72>}, {pipeline_mode = #tpu.pipeline_mode<synchronous>, transform_indices = @transform_5, window_bounds = array<i64: 8, 1>}, {pipeline_mode = #tpu.pipeline_mode<synchronous>, transform_indices = @transform_6, window_bounds = array<i64: 8, 1>}, {pipeline_mode = #tpu.pipeline_mode<synchronous>, transform_indices = @transform_7, window_bounds = array<i64: 3, 256>}, {transform_indices = @transform_8, window_bounds = array<i64: 1, 8, 256>}]} {
    %c0 = arith.constant 0 : index
    %c0_0 = arith.constant 0 : index
    %0 = vector.load %arg8[%c0, %c0_0] : memref<3x256xf32, #tpu.memory_space<vmem>>, vector<1x256xf32>
    %c2 = arith.constant 2 : index
    %c0_1 = arith.constant 0 : index
    %1 = vector.load %arg8[%c2, %c0_1] : memref<3x256xf32, #tpu.memory_space<vmem>>, vector<1x256xf32>
    %c0_2 = arith.constant 0 : index
    %c0_3 = arith.constant 0 : index
    %c0_4 = arith.constant 0 : index
    %2 = vector.load %arg1[%c0_2, %c0_3, %c0_4] : memref<1x8x256xf32, #tpu.memory_space<vmem>>, vector<1x8x256xf32>
    %3 = vector.shape_cast %2 : vector<1x8x256xf32> to vector<8x256xf32>
    %cst = arith.constant 0.000000e+00 : f32
    %4 = vector.broadcast %cst : f32 to vector<8x128xf32>
    %c0_5 = arith.constant 0 : index
    %c0_6 = arith.constant 0 : index
    %5 = vector.load %arg10[%c0_5, %c0_6] : memref<8x512xf32, #tpu.memory_space<vmem>>, vector<8x128xf32>
    tpu.vector_store %arg10[%c0_5, %c0_6], %4 {strides = array<i32>} : memref<8x512xf32, #tpu.memory_space<vmem>>, vector<8x128xf32>,
    %cst_7 = arith.constant 0.000000e+00 : f32
    %6 = vector.broadcast %cst_7 : f32 to vector<8x128xf32>
    %c0_8 = arith.constant 0 : index
    %c384 = arith.constant 384 : index
    %7 = vector.load %arg10[%c0_8, %c384] : memref<8x512xf32, #tpu.memory_space<vmem>>, vector<8x128xf32>
    tpu.vector_store %arg10[%c0_8, %c384], %6 {strides = array<i32>} : memref<8x512xf32, #tpu.memory_space<vmem>>, vector<8x128xf32>,
    %cst_9 = arith.constant 0.000000e+00 : f32
    %8 = vector.broadcast %cst_9 : f32 to vector<8x128xf32>
    %c0_10 = arith.constant 0 : index
    %c0_11 = arith.constant 0 : index
    %9 = vector.load %arg11[%c0_10, %c0_11] : memref<8x512xf32, #tpu.memory_space<vmem>>, vector<8x128xf32>
    tpu.vector_store %arg11[%c0_10, %c0_11], %8 {strides = array<i32>} : memref<8x512xf32, #tpu.memory_space<vmem>>, vector<8x128xf32>,
    %cst_12 = arith.constant 0.000000e+00 : f32
    %10 = vector.broadcast %cst_12 : f32 to vector<8x128xf32>
    %c0_13 = arith.constant 0 : index
    %c384_14 = arith.constant 384 : index
    %11 = vector.load %arg11[%c0_13, %c384_14] : memref<8x512xf32, #tpu.memory_space<vmem>>, vector<8x128xf32>
    tpu.vector_store %arg11[%c0_13, %c384_14], %10 {strides = array<i32>} : memref<8x512xf32, #tpu.memory_space<vmem>>, vector<8x128xf32>,
    %c0_15 = arith.constant 0 : index
    %c128 = arith.constant 128 : index
    %12 = vector.load %arg10[%c0_15, %c128] : memref<8x512xf32, #tpu.memory_space<vmem>>, vector<8x256xf32>
    tpu.vector_store %arg10[%c0_15, %c128], %3 {strides = array<i32>} : memref<8x512xf32, #tpu.memory_space<vmem>>, vector<8x256xf32>,
    %c0_16 = arith.constant 0 : index
    %c0_17 = arith.constant 0 : index
    %13 = vector.load %arg2[%c0_16, %c0_17] : memref<8x72xf32, #tpu.memory_space<vmem>>, vector<8x72xf32>
    %c0_18 = arith.constant 0 : index
    %c111 = arith.constant 111 : index
    %14 = vector.load %arg10[%c0_18, %c111] : memref<8x512xf32, #tpu.memory_space<vmem>>, vector<8x256xf32>
    %15 = vector.broadcast %0 : vector<1x256xf32> to vector<8x256xf32>
    %16 = arith.mulf %14, %15 : vector<8x256xf32>
    %c0_19 = arith.constant 0 : index
    %c112 = arith.constant 112 : index
    %17 = vector.load %arg10[%c0_19, %c112] : memref<8x512xf32, #tpu.memory_space<vmem>>, vector<8x256xf32>
    %c0_20 = arith.constant 0 : index
    %c113 = arith.constant 113 : index
    %18 = vector.load %arg10[%c0_20, %c113] : memref<8x512xf32, #tpu.memory_space<vmem>>, vector<8x256xf32>
    %19 = vector.broadcast %1 : vector<1x256xf32> to vector<8x256xf32>
    %20 = arith.mulf %18, %19 : vector<8x256xf32>
    %c0_21 = arith.constant 0 : index
    %c127 = arith.constant 127 : index
    %21 = vector.load %arg10[%c0_21, %c127] : memref<8x512xf32, #tpu.memory_space<vmem>>, vector<8x256xf32>
    %22 = vector.broadcast %0 : vector<1x256xf32> to vector<8x256xf32>
    %23 = arith.mulf %21, %22 : vector<8x256xf32>
    %c0_22 = arith.constant 0 : index
    %c128_23 = arith.constant 128 : index
    %24 = vector.load %arg10[%c0_22, %c128_23] : memref<8x512xf32, #tpu.memory_space<vmem>>, vector<8x256xf32>
    %c0_24 = arith.constant 0 : index
    %c129 = arith.constant 129 : index
    %25 = vector.load %arg10[%c0_24, %c129] : memref<8x512xf32, #tpu.memory_space<vmem>>, vector<8x256xf32>
    %26 = vector.broadcast %1 : vector<1x256xf32> to vector<8x256xf32>
    %27 = arith.mulf %25, %26 : vector<8x256xf32>
    %c0_25 = arith.constant 0 : index
    %c143 = arith.constant 143 : index
    %28 = vector.load %arg10[%c0_25, %c143] : memref<8x512xf32, #tpu.memory_space<vmem>>, vector<8x256xf32>
    %29 = vector.broadcast %0 : vector<1x256xf32> to vector<8x256xf32>
    %30 = arith.mulf %28, %29 : vector<8x256xf32>
    %c0_26 = arith.constant 0 : index
    %c144 = arith.constant 144 : index
    %31 = vector.load %arg10[%c0_26, %c144] : memref<8x512xf32, #tpu.memory_space<vmem>>, vector<8x256xf32>
    %c0_27 = arith.constant 0 : index
    %c145 = arith.constant 145 : index
    %32 = vector.load %arg10[%c0_27, %c145] : memref<8x512xf32, #tpu.memory_space<vmem>>, vector<8x256xf32>
    %33 = vector.broadcast %1 : vector<1x256xf32> to vector<8x256xf32>
    %34 = arith.mulf %32, %33 : vector<8x256xf32>
    %35 = tpu.concatenate %16, %17, %20, %23, %24, %27, %30, %31, %34 in 0 : vector<8x256xf32>, vector<8x256xf32>, vector<8x256xf32>, vector<8x256xf32>, vector<8x256xf32>, vector<8x256xf32>, vector<8x256xf32>, vector<8x256xf32>, vector<8x256xf32> -> vector<72x256xf32>
    %cst_28 = arith.constant dense<0.000000e+00> : vector<8x256xf32>
    %36 = tpu.matmul %13, %35, %cst_28 {dimension_numbers = #tpu.dot_dimension_numbers<[1], [0], [0], [1], [0, 0, 1, 1], [], []>} : vector<8x72xf32>, vector<72x256xf32>, vector<8x256xf32> -> vector<8x256xf32>
    %c0_29 = arith.constant 0 : index
    %c0_30 = arith.constant 0 : index
    %37 = vector.load %arg3[%c0_29, %c0_30] : memref<8x1xf32, #tpu.memory_space<vmem>>, vector<8x1xf32>
    %38 = vector.broadcast %37 : vector<8x1xf32> to vector<8x256xf32>
    %39 = arith.mulf %36, %38 : vector<8x256xf32>
    %c0_31 = arith.constant 0 : index
    %c0_32 = arith.constant 0 : index
    %40 = vector.load %arg4[%c0_31, %c0_32] : memref<8x1xf32, #tpu.memory_space<vmem>>, vector<8x1xf32>
    %41 = vector.broadcast %40 : vector<8x1xf32> to vector<8x256xf32>
    %42 = arith.addf %39, %41 : vector<8x256xf32>
    %cst_33 = arith.constant 0.000000e+00 : f32
    %43 = vector.broadcast %cst_33 : f32 to vector<8x256xf32>
    %44 = arith.maximumf %42, %43 : vector<8x256xf32>
    %c0_34 = arith.constant 0 : index
    %c128_35 = arith.constant 128 : index
    %45 = vector.load %arg11[%c0_34, %c128_35] : memref<8x512xf32, #tpu.memory_space<vmem>>, vector<8x256xf32>
    tpu.vector_store %arg11[%c0_34, %c128_35], %44 {strides = array<i32>} : memref<8x512xf32, #tpu.memory_space<vmem>>, vector<8x256xf32>,
    %c0_36 = arith.constant 0 : index
    %c0_37 = arith.constant 0 : index
    %46 = vector.load %arg5[%c0_36, %c0_37] : memref<8x72xf32, #tpu.memory_space<vmem>>, vector<8x72xf32>
    %c0_38 = arith.constant 0 : index
    %c111_39 = arith.constant 111 : index
    %47 = vector.load %arg11[%c0_38, %c111_39] : memref<8x512xf32, #tpu.memory_space<vmem>>, vector<8x256xf32>
    %48 = vector.broadcast %0 : vector<1x256xf32> to vector<8x256xf32>
    %49 = arith.mulf %47, %48 : vector<8x256xf32>
    %c0_40 = arith.constant 0 : index
    %c112_41 = arith.constant 112 : index
    %50 = vector.load %arg11[%c0_40, %c112_41] : memref<8x512xf32, #tpu.memory_space<vmem>>, vector<8x256xf32>
    %c0_42 = arith.constant 0 : index
    %c113_43 = arith.constant 113 : index
    %51 = vector.load %arg11[%c0_42, %c113_43] : memref<8x512xf32, #tpu.memory_space<vmem>>, vector<8x256xf32>
    %52 = vector.broadcast %1 : vector<1x256xf32> to vector<8x256xf32>
    %53 = arith.mulf %51, %52 : vector<8x256xf32>
    %c0_44 = arith.constant 0 : index
    %c127_45 = arith.constant 127 : index
    %54 = vector.load %arg11[%c0_44, %c127_45] : memref<8x512xf32, #tpu.memory_space<vmem>>, vector<8x256xf32>
    %55 = vector.broadcast %0 : vector<1x256xf32> to vector<8x256xf32>
    %56 = arith.mulf %54, %55 : vector<8x256xf32>
    %c0_46 = arith.constant 0 : index
    %c128_47 = arith.constant 128 : index
    %57 = vector.load %arg11[%c0_46, %c128_47] : memref<8x512xf32, #tpu.memory_space<vmem>>, vector<8x256xf32>
    %c0_48 = arith.constant 0 : index
    %c129_49 = arith.constant 129 : index
    %58 = vector.load %arg11[%c0_48, %c129_49] : memref<8x512xf32, #tpu.memory_space<vmem>>, vector<8x256xf32>
    %59 = vector.broadcast %1 : vector<1x256xf32> to vector<8x256xf32>
    %60 = arith.mulf %58, %59 : vector<8x256xf32>
    %c0_50 = arith.constant 0 : index
    %c143_51 = arith.constant 143 : index
    %61 = vector.load %arg11[%c0_50, %c143_51] : memref<8x512xf32, #tpu.memory_space<vmem>>, vector<8x256xf32>
    %62 = vector.broadcast %0 : vector<1x256xf32> to vector<8x256xf32>
    %63 = arith.mulf %61, %62 : vector<8x256xf32>
    %c0_52 = arith.constant 0 : index
    %c144_53 = arith.constant 144 : index
    %64 = vector.load %arg11[%c0_52, %c144_53] : memref<8x512xf32, #tpu.memory_space<vmem>>, vector<8x256xf32>
    %c0_54 = arith.constant 0 : index
    %c145_55 = arith.constant 145 : index
    %65 = vector.load %arg11[%c0_54, %c145_55] : memref<8x512xf32, #tpu.memory_space<vmem>>, vector<8x256xf32>
    %66 = vector.broadcast %1 : vector<1x256xf32> to vector<8x256xf32>
    %67 = arith.mulf %65, %66 : vector<8x256xf32>
    %68 = tpu.concatenate %49, %50, %53, %56, %57, %60, %63, %64, %67 in 0 : vector<8x256xf32>, vector<8x256xf32>, vector<8x256xf32>, vector<8x256xf32>, vector<8x256xf32>, vector<8x256xf32>, vector<8x256xf32>, vector<8x256xf32>, vector<8x256xf32> -> vector<72x256xf32>
    %cst_56 = arith.constant dense<0.000000e+00> : vector<8x256xf32>
    %69 = tpu.matmul %46, %68, %cst_56 {dimension_numbers = #tpu.dot_dimension_numbers<[1], [0], [0], [1], [0, 0, 1, 1], [], []>} : vector<8x72xf32>, vector<72x256xf32>, vector<8x256xf32> -> vector<8x256xf32>
    %c0_57 = arith.constant 0 : index
    %c0_58 = arith.constant 0 : index
    %70 = vector.load %arg6[%c0_57, %c0_58] : memref<8x1xf32, #tpu.memory_space<vmem>>, vector<8x1xf32>
    %71 = vector.broadcast %70 : vector<8x1xf32> to vector<8x256xf32>
    %72 = arith.mulf %69, %71 : vector<8x256xf32>
    %c0_59 = arith.constant 0 : index
    %c0_60 = arith.constant 0 : index
    %73 = vector.load %arg7[%c0_59, %c0_60] : memref<8x1xf32, #tpu.memory_space<vmem>>, vector<8x1xf32>
    %74 = vector.broadcast %73 : vector<8x1xf32> to vector<8x256xf32>
    %75 = arith.addf %72, %74 : vector<8x256xf32>
    %cst_61 = arith.constant 0.000000e+00 : f32
    %76 = vector.broadcast %cst_61 : f32 to vector<8x256xf32>
    %77 = arith.maximumf %75, %76 : vector<8x256xf32>
    %78 = arith.addf %77, %3 : vector<8x256xf32>
    %cst_62 = arith.constant 0.000000e+00 : f32
    %79 = vector.broadcast %cst_62 : f32 to vector<8x256xf32>
    %80 = arith.maximumf %78, %79 : vector<8x256xf32>
    %c0_63 = arith.constant 0 : index
    %c0_64 = arith.constant 0 : index
    %c0_65 = arith.constant 0 : index
    %81 = vector.load %arg9[%c0_63, %c0_64, %c0_65] : memref<1x8x256xf32, #tpu.memory_space<vmem>>, vector<1x8x256xf32>
    %82 = vector.shape_cast %81 : vector<1x8x256xf32> to vector<8x256xf32>
    %83 = vector.shape_cast %80 : vector<8x256xf32> to vector<1x8x256xf32>
    tpu.vector_store %arg9[%c0_63, %c0_64, %c0_65], %83 {strides = array<i32>} : memref<1x8x256xf32, #tpu.memory_space<vmem>>, vector<1x8x256xf32>,
    return
  }
  func.func @transform_0(%arg0: i32) -> (i32, i32, i32) {
    %c0_i32 = arith.constant 0 : i32
    %c0_i32_0 = arith.constant 0 : i32
    %c0_i32_1 = arith.constant 0 : i32
    return %arg0, %c0_i32, %c0_i32_0 : i32, i32, i32
  }
  func.func @transform_1(%arg0: i32) -> (i32, i32) {
    %c0_i32 = arith.constant 0 : i32
    %c0_i32_0 = arith.constant 0 : i32
    %c0_i32_1 = arith.constant 0 : i32
    return %c0_i32, %c0_i32_0 : i32, i32
  }
  func.func @transform_2(%arg0: i32) -> (i32, i32) {
    %c0_i32 = arith.constant 0 : i32
    %c0_i32_0 = arith.constant 0 : i32
    %c0_i32_1 = arith.constant 0 : i32
    return %c0_i32, %c0_i32_0 : i32, i32
  }
  func.func @transform_3(%arg0: i32) -> (i32, i32) {
    %c0_i32 = arith.constant 0 : i32
    %c0_i32_0 = arith.constant 0 : i32
    %c0_i32_1 = arith.constant 0 : i32
    return %c0_i32, %c0_i32_0 : i32, i32
  }
  func.func @transform_4(%arg0: i32) -> (i32, i32) {
    %c0_i32 = arith.constant 0 : i32
    %c0_i32_0 = arith.constant 0 : i32
    %c0_i32_1 = arith.constant 0 : i32
    return %c0_i32, %c0_i32_0 : i32, i32
  }
  func.func @transform_5(%arg0: i32) -> (i32, i32) {
    %c0_i32 = arith.constant 0 : i32
    %c0_i32_0 = arith.constant 0 : i32
    %c0_i32_1 = arith.constant 0 : i32
    return %c0_i32, %c0_i32_0 : i32, i32
  }
  func.func @transform_6(%arg0: i32) -> (i32, i32) {
    %c0_i32 = arith.constant 0 : i32
    %c0_i32_0 = arith.constant 0 : i32
    %c0_i32_1 = arith.constant 0 : i32
    return %c0_i32, %c0_i32_0 : i32, i32
  }
  func.func @transform_7(%arg0: i32) -> (i32, i32) {
    %c0_i32 = arith.constant 0 : i32
    %c0_i32_0 = arith.constant 0 : i32
    %c0_i32_1 = arith.constant 0 : i32
    return %c0_i32, %c0_i32_0 : i32, i32
  }
  func.func @transform_8(%arg0: i32) -> (i32, i32, i32) {
    %c0_i32 = arith.constant 0 : i32
    %c0_i32_0 = arith.constant 0 : i32
    %c0_i32_1 = arith.constant 0 : i32
    return %arg0, %c0_i32, %c0_i32_0 : i32, i32, i32
  }
}

</mosaic_0001>

<llo_original>
// kernel: tpu_custom_call.1
$region0: #{tpu_custom_call.1}
  #allocation0 [shape = 'u32[]', space=smem, size = 0x4, offset = 0x4, fixed_abs, tag = 'smem constant byte address 0x4 - core index']
  #allocation1 [shape = 'u32[144,128]{1,0:T(1,128)}', space=vmem, size = 0x12000, scoped, tag = 'internal scratch']
  #allocation2 [shape = 'f32[8,512]{1,0:T(8,128)}', space=vmem, size = 0x4000, scoped, tag = 'scratch operand']
  #allocation3 [shape = 'f32[8,512]{1,0:T(8,128)}', space=vmem, size = 0x4000, scoped, tag = 'scratch operand']
  %s0 = inlined_call_operand.vmem [shape: f32[2,8,256], index: 0, kind: input, shape index: {}]
  %s1 = inlined_call_operand.hbm [shape: f32[8,72], index: 1, kind: input, shape index: {}]
  %s2 = inlined_call_operand.vmem [shape: f32[8,1], index: 2, kind: input, shape index: {}]
  %s3 = inlined_call_operand.vmem [shape: f32[8,1], index: 3, kind: input, shape index: {}]
  %s4 = inlined_call_operand.vmem [shape: f32[8,72], index: 4, kind: input, shape index: {}]
  %s5 = inlined_call_operand.vmem [shape: f32[8,1], index: 5, kind: input, shape index: {}]
  %s6 = inlined_call_operand.vmem [shape: f32[8,1], index: 6, kind: input, shape index: {}]
  %s7 = inlined_call_operand.vmem [shape: f32[3,256], index: 7, kind: input, shape index: {}]
  %s8 = inlined_call_operand.hbm [shape: f32[2,8,256], index: 8, kind: output, shape index: {}]
  %s9 = sld [smem:[#allocation0]]
  $region69: #{tpu_custom_call.1} parent=0
    _
  %s11 = ssub.s32 1, %s9
  %s12 = scalar_select 0, %s11, %s9
  $region1: #{tpu_custom_call.1} parent=0
    #allocation4 [shape = 'u8[4096]{0}', space=vmem, size = 0x1000, scoped, tag = 'input window, operand 1, single buffered']
    #allocation5 [shape = 's32[2]{0}', space=sflag, size = 0x8, scoped, tag = 'scoped memory for tpu_custom_call.1']
    #allocation6 [shape = 's32[2]{0}', space=sflag, size = 0x8, scoped, tag = 'scoped memory for tpu_custom_call.1']
    #allocation7 [shape = 'u8[16384]{0}', space=vmem, size = 0x4000, scoped, tag = 'output window, operand 0']
    %13 = vsyncpa [#allocation5], 0
    %14 = vsyncpa [#allocation6], 0
    %s15 = scalar_lea.sflag [#allocation6], 1
    %16 = vsyncpa %s15, 0
    loop: start=0, step=1, limit=4
    $region2: #{tpu_custom_call.1} parent=1 // loop_pre_header
      _
    $region3: #{tpu_custom_call.1} parent=1 // loop_header
      %s18 = sphi 0, %s22
      %p19 = scmp.ge.s32.totalorder %s18, 4
      %s28 = sphi 0, %s30
      %s31 = sphi 0, %s28
      %s32 = sphi 0, %s31
      %s48 = sphi 0, %s32
      %s52 = sphi 0, %s52
      %s54 = sphi 0, %s52
      %s55 = sphi 0, %s54
      %s69 = sphi 0, %s55
      %s73 = sphi 0, %s73
      %s75 = sphi 0, %s73
      %s76 = sphi 0, %s75
      %s90 = sphi 0, %s76
      %s94 = sphi 0, %s94
      %s96 = sphi 0, %s94
      %s97 = sphi 0, %s96
      %s111 = sphi 0, %s97
      %s115 = sphi 0, %s115
      %s117 = sphi 0, %s115
      %s118 = sphi 0, %s117
      %s132 = sphi 0, %s118
      %s136 = sphi 0, %s136
      %s138 = sphi 0, %s136
      %s139 = sphi 0, %s138
      %s153 = sphi 0, %s139
      %s157 = sphi 0, %s157
      %s159 = sphi 0, %s157
      %s160 = sphi 0, %s159
      %s174 = sphi 0, %s160
      %s178 = sphi 0, %s178
      %s180 = sphi 0, %s178
      %s181 = sphi 0, %s180
      %s195 = sphi 0, %s181
      %s201 = sphi 0, %s203
      %s204 = sphi 0, %s201
      %s205 = sphi 0, %s204
      %s221 = sphi 0, %s205
    $region4: #{tpu_custom_call.1} parent=1 // loop_header_branch
      %21 = sbr.rel (%p19) target = $region8
    $region5: #{tpu_custom_call.1} parent=1 // loop_body
      %s23 = ssub.s32 %s18, 1
      %s24 = ssub.s32 %s18, 2
      %s25 = sadd.s32 %s18, 1
      %s26 = ssub.s32 %s18, %s25
      %p27 = scmp.eq.s32.totalorder %s26, 0
      %s29 = sadd.s32 %s28, 1
      %s30 = scalar_select %p27, %s28, %s29
      %p33 = pneg %p27
      %p34 = scmp.eq.s32.totalorder %s18, 1
      %p35 = por %p33, %p34
      %p36 = scmp.ne.s32.totalorder %s28, %s31
      %p37 = scmp.eq.s32.totalorder %s18, 0
      %p38 = por %p36, %p37
      %p39 = scmp.ne.s32.totalorder %s28, %s31
      %p40 = scmp.eq.s32.totalorder %s23, 1
      %p41 = por %p39, %p40
      %p42 = scmp.ne.s32.totalorder %s31, %s32
      %p43 = scmp.eq.s32.totalorder %s23, 0
      %p44 = por %p42, %p43
      %p45 = scmp.ne.s32.totalorder %s31, %s32
      %p46 = scmp.eq.s32.totalorder %s24, 1
      %p47 = por %p45, %p46
      %p49 = scmp.ne.s32.totalorder %s32, %s48
      %p50 = scmp.eq.s32.totalorder %s24, 0
      %p51 = por %p49, %p50
      %s53 = sadd.s32 %s52, 1
      %p56 = scmp.eq.s32.totalorder %s18, 1
      %p57 = scmp.ne.s32.totalorder %s52, %s54
      %p58 = scmp.eq.s32.totalorder %s18, 0
      %p59 = por %p57, %p58
      %p60 = scmp.ne.s32.totalorder %s52, %s54
      %p61 = scmp.eq.s32.totalorder %s23, 1
      %p62 = por %p60, %p61
      %p63 = scmp.ne.s32.totalorder %s54, %s55
      %p64 = scmp.eq.s32.totalorder %s23, 0
      %p65 = por %p63, %p64
      %p66 = scmp.ne.s32.totalorder %s54, %s55
      %p67 = scmp.eq.s32.totalorder %s24, 1
      %p68 = por %p66, %p67
      %p70 = scmp.ne.s32.totalorder %s55, %s69
      %p71 = scmp.eq.s32.totalorder %s24, 0
      %p72 = por %p70, %p71
      %s74 = sadd.s32 %s73, 1
      %p77 = scmp.eq.s32.totalorder %s18, 1
      %p78 = scmp.ne.s32.totalorder %s73, %s75
      %p79 = scmp.eq.s32.totalorder %s18, 0
      %p80 = por %p78, %p79
      %p81 = scmp.ne.s32.totalorder %s73, %s75
      %p82 = scmp.eq.s32.totalorder %s23, 1
      %p83 = por %p81, %p82
      %p84 = scmp.ne.s32.totalorder %s75, %s76
      %p85 = scmp.eq.s32.totalorder %s23, 0
      %p86 = por %p84, %p85
      %p87 = scmp.ne.s32.totalorder %s75, %s76
      %p88 = scmp.eq.s32.totalorder %s24, 1
      %p89 = por %p87, %p88
      %p91 = scmp.ne.s32.totalorder %s76, %s90
      %p92 = scmp.eq.s32.totalorder %s24, 0
      %p93 = por %p91, %p92
      %s95 = sadd.s32 %s94, 1
      %p98 = scmp.eq.s32.totalorder %s18, 1
      %p99 = scmp.ne.s32.totalorder %s94, %s96
      %p100 = scmp.eq.s32.totalorder %s18, 0
      %p101 = por %p99, %p100
      %p102 = scmp.ne.s32.totalorder %s94, %s96
      %p103 = scmp.eq.s32.totalorder %s23, 1
      %p104 = por %p102, %p103
      %p105 = scmp.ne.s32.totalorder %s96, %s97
      %p106 = scmp.eq.s32.totalorder %s23, 0
      %p107 = por %p105, %p106
      %p108 = scmp.ne.s32.totalorder %s96, %s97
      %p109 = scmp.eq.s32.totalorder %s24, 1
      %p110 = por %p108, %p109
      %p112 = scmp.ne.s32.totalorder %s97, %s111
      %p113 = scmp.eq.s32.totalorder %s24, 0
      %p114 = por %p112, %p113
      %s116 = sadd.s32 %s115, 1
      %p119 = scmp.eq.s32.totalorder %s18, 1
      %p120 = scmp.ne.s32.totalorder %s115, %s117
      %p121 = scmp.eq.s32.totalorder %s18, 0
      %p122 = por %p120, %p121
      %p123 = scmp.ne.s32.totalorder %s115, %s117
      %p124 = scmp.eq.s32.totalorder %s23, 1
      %p125 = por %p123, %p124
      %p126 = scmp.ne.s32.totalorder %s117, %s118
      %p127 = scmp.eq.s32.totalorder %s23, 0
      %p128 = por %p126, %p127
      %p129 = scmp.ne.s32.totalorder %s117, %s118
      %p130 = scmp.eq.s32.totalorder %s24, 1
      %p131 = por %p129, %p130
      %p133 = scmp.ne.s32.totalorder %s118, %s132
      %p134 = scmp.eq.s32.totalorder %s24, 0
      %p135 = por %p133, %p134
      %s137 = sadd.s32 %s136, 1
      %p140 = scmp.eq.s32.totalorder %s18, 1
      %p141 = scmp.ne.s32.totalorder %s136, %s138
      %p142 = scmp.eq.s32.totalorder %s18, 0
      %p143 = por %p141, %p142
      %p144 = scmp.ne.s32.totalorder %s136, %s138
      %p145 = scmp.eq.s32.totalorder %s23, 1
      %p146 = por %p144, %p145
      %p147 = scmp.ne.s32.totalorder %s138, %s139
      %p148 = scmp.eq.s32.totalorder %s23, 0
      %p149 = por %p147, %p148
      %p150 = scmp.ne.s32.totalorder %s138, %s139
      %p151 = scmp.eq.s32.totalorder %s24, 1
      %p152 = por %p150, %p151
      %p154 = scmp.ne.s32.totalorder %s139, %s153
      %p155 = scmp.eq.s32.totalorder %s24, 0
      %p156 = por %p154, %p155
      %s158 = sadd.s32 %s157, 1
      %p161 = scmp.eq.s32.totalorder %s18, 1
      %p162 = scmp.ne.s32.totalorder %s157, %s159
      %p163 = scmp.eq.s32.totalorder %s18, 0
      %p164 = por %p162, %p163
      %p165 = scmp.ne.s32.totalorder %s157, %s159
      %p166 = scmp.eq.s32.totalorder %s23, 1
      %p167 = por %p165, %p166
      %p168 = scmp.ne.s32.totalorder %s159, %s160
      %p169 = scmp.eq.s32.totalorder %s23, 0
      %p170 = por %p168, %p169
      %p171 = scmp.ne.s32.totalorder %s159, %s160
      %p172 = scmp.eq.s32.totalorder %s24, 1
      %p173 = por %p171, %p172
      %p175 = scmp.ne.s32.totalorder %s160, %s174
      %p176 = scmp.eq.s32.totalorder %s24, 0
      %p177 = por %p175, %p176
      %s179 = sadd.s32 %s178, 1
      %p182 = scmp.eq.s32.totalorder %s18, 1
      %p183 = scmp.ne.s32.totalorder %s178, %s180
      %p184 = scmp.eq.s32.totalorder %s18, 0
      %p185 = por %p183, %p184
      %p186 = scmp.ne.s32.totalorder %s178, %s180
      %p187 = scmp.eq.s32.totalorder %s23, 1
      %p188 = por %p186, %p187
      %p189 = scmp.ne.s32.totalorder %s180, %s181
      %p190 = scmp.eq.s32.totalorder %s23, 0
      %p191 = por %p189, %p190
      %p192 = scmp.ne.s32.totalorder %s180, %s181
      %p193 = scmp.eq.s32.totalorder %s24, 1
      %p194 = por %p192, %p193
      %p196 = scmp.ne.s32.totalorder %s181, %s195
      %p197 = scmp.eq.s32.totalorder %s24, 0
      %p198 = por %p196, %p197
      %s199 = ssub.s32 %s18, %s25
      %p200 = scmp.eq.s32.totalorder %s199, 0
      %s202 = sadd.s32 %s201, 1
      %s203 = scalar_select %p200, %s201, %s202
      %p206 = pneg %p200
      %p207 = scmp.eq.s32.totalorder %s18, 1
      %p208 = por %p206, %p207
      %p209 = scmp.ne.s32.totalorder %s201, %s204
      %p210 = scmp.eq.s32.totalorder %s18, 0
      %p211 = por %p209, %p210
      %p212 = scmp.ne.s32.totalorder %s201, %s204
      %p213 = scmp.eq.s32.totalorder %s23, 1
      %p214 = por %p212, %p213
      %p215 = scmp.ne.s32.totalorder %s204, %s205
      %p216 = scmp.eq.s32.totalorder %s23, 0
      %p217 = por %p215, %p216
      %p218 = scmp.ne.s32.totalorder %s204, %s205
      %p219 = scmp.eq.s32.totalorder %s24, 1
      %p220 = por %p218, %p219
      %p222 = scmp.ne.s32.totalorder %s205, %s221
      %p223 = scmp.eq.s32.totalorder %s24, 0
      %p224 = por %p222, %p223
      %p225 = scmp.le.s32.totalorder 1, %s18
      %p226 = scmp.lt.s32.totalorder %s18, 3
      %p227 = pnand %p225, %p226
      %p228 = pneg %p227
      // Predicated region
      $region9: #{tpu_custom_call.1} parent=5 // pred_check
        _
      $region10: #{tpu_custom_call.1} parent=5 // pred_check_branch
        %230 = sbr.rel (%p227) target = $region12
      $region11: #{tpu_custom_call.1} parent=5 // pred_region
        %s231 = ssub.s32 %s18, 1
        // Predicated region
        $region13: #{tpu_custom_call.1} parent=11 // pred_check
          %p232 = pneg %p65
        $region14: #{tpu_custom_call.1} parent=11 // pred_check_branch
          %234 = sbr.rel (%p232) target = $region16
        $region15: #{tpu_custom_call.1} parent=11 // pred_region
          %s236 = ssub.s32 128, 128
          %237 = vsyncadd [#allocation5], %s236
          %s239 = sshll.u32 [#allocation4], 4
          %s240 = int_to_ptr.vmem [resolvable:$true] %s239
          %242 = dma.hbm_to_vmem [thread:$0]  %s1, 128, %s240, [#allocation5]
        $region16: #{tpu_custom_call.1} parent=11 // pred_fallthru
          _
        // Predicated region
        $region17: #{tpu_custom_call.1} parent=11 // pred_check
          %p243 = pneg %p86
        $region18: #{tpu_custom_call.1} parent=11 // pred_check_branch
          %245 = sbr.rel (%p243) target = $region20
        $region19: #{tpu_custom_call.1} parent=11 // pred_region
          _
        $region20: #{tpu_custom_call.1} parent=11 // pred_fallthru
          _
        // Predicated region
        $region21: #{tpu_custom_call.1} parent=11 // pred_check
          %p246 = pneg %p107
        $region22: #{tpu_custom_call.1} parent=11 // pred_check_branch
          %248 = sbr.rel (%p246) target = $region24
        $region23: #{tpu_custom_call.1} parent=11 // pred_region
          _
        $region24: #{tpu_custom_call.1} parent=11 // pred_fallthru
          _
        // Predicated region
        $region25: #{tpu_custom_call.1} parent=11 // pred_check
          %p249 = pneg %p128
        $region26: #{tpu_custom_call.1} parent=11 // pred_check_branch
          %251 = sbr.rel (%p249) target = $region28
        $region27: #{tpu_custom_call.1} parent=11 // pred_region
          _
        $region28: #{tpu_custom_call.1} parent=11 // pred_fallthru
          _
        // Predicated region
        $region29: #{tpu_custom_call.1} parent=11 // pred_check
          %p252 = pneg %p149
        $region30: #{tpu_custom_call.1} parent=11 // pred_check_branch
          %254 = sbr.rel (%p252) target = $region32
        $region31: #{tpu_custom_call.1} parent=11 // pred_region
          _
        $region32: #{tpu_custom_call.1} parent=11 // pred_fallthru
          _
        // Predicated region
        $region33: #{tpu_custom_call.1} parent=11 // pred_check
          %p255 = pneg %p170
        $region34: #{tpu_custom_call.1} parent=11 // pred_check_branch
          %257 = sbr.rel (%p255) target = $region36
        $region35: #{tpu_custom_call.1} parent=11 // pred_region
          _
        $region36: #{tpu_custom_call.1} parent=11 // pred_fallthru
          _
        // Predicated region
        $region37: #{tpu_custom_call.1} parent=11 // pred_check
          %p258 = pneg %p191
        $region38: #{tpu_custom_call.1} parent=11 // pred_check_branch
          %260 = sbr.rel (%p258) target = $region40
        $region39: #{tpu_custom_call.1} parent=11 // pred_region
          _
        $region40: #{tpu_custom_call.1} parent=11 // pred_fallthru
          _
      $region12: #{tpu_custom_call.1} parent=5 // pred_fallthru
        _
      %p261 = scmp.lt.s32.totalorder %s18, 2
      // Predicated region
      $region41: #{tpu_custom_call.1} parent=5 // pred_check
        %p262 = pneg %p261
      $region42: #{tpu_custom_call.1} parent=5 // pred_check_branch
        %264 = sbr.rel (%p262) target = $region44
      $region43: #{tpu_custom_call.1} parent=5 // pred_region
        // Predicated region
        $region45: #{tpu_custom_call.1} parent=43 // pred_check
          %p265 = pneg %p38
        $region46: #{tpu_custom_call.1} parent=43 // pred_check_branch
          %267 = sbr.rel (%p265) target = $region48
        $region47: #{tpu_custom_call.1} parent=43 // pred_region
          %p268 = scmp.lt.s32.totalorder %s18, 1
          %s269 = scalar_select %p268, %s18, 1
          %s270 = smul.addr %s269, 2
          %s271 = smul.addr %s270, 8
          %s272 = scalar_lea.vmem %s0, %s271
        $region48: #{tpu_custom_call.1} parent=43 // pred_fallthru
          _
      $region44: #{tpu_custom_call.1} parent=5 // pred_fallthru
        _
      %p273 = scmp.le.s32.totalorder 1, %s18
      %p274 = scmp.lt.s32.totalorder %s18, 3
      %p275 = pnand %p273, %p274
      %p276 = pneg %p275
      // Predicated region
      $region49: #{tpu_custom_call.1} parent=5 // pred_check
        _
      $region50: #{tpu_custom_call.1} parent=5 // pred_check_branch
        %278 = sbr.rel (%p275) target = $region52
      $region51: #{tpu_custom_call.1} parent=5 // pred_region
        %s279 = ssub.s32 %s18, 1
        // Predicated region
        $region53: #{tpu_custom_call.1} parent=51 // pred_check
          %p280 = pneg %p65
        $region54: #{tpu_custom_call.1} parent=51 // pred_check_branch
          %282 = sbr.rel (%p280) target = $region56
        $region55: #{tpu_custom_call.1} parent=51 // pred_region
          %283 = dma.done [#allocation5], 128
        $region56: #{tpu_custom_call.1} parent=51 // pred_fallthru
          _
        %p284 = scmp.lt.s32.totalorder %s23, 1
        %s285 = scalar_select %p284, %s23, 1
        %s286 = smul.addr %s285, 2
        %s287 = smul.addr %s286, 8
        %s288 = scalar_lea.vmem %s0, %s287
        %p289 = pneg %p44
        %p290 = pneg %p41
        %p291 = pneg %p65
        %p292 = pneg %p62
        %p293 = pneg %p86
        %p294 = pneg %p83
        %p295 = pneg %p107
        %p296 = pneg %p104
        %p297 = pneg %p128
        %p298 = pneg %p125
        %p299 = pneg %p149
        %p300 = pneg %p146
        %p301 = pneg %p170
        %p302 = pneg %p167
        %p303 = pneg %p191
        %p304 = pneg %p188
        %p305 = pneg %p217
        %p306 = pneg %p214
        %s307 = sand.u32 %s204, 1
        %s308 = scalar_lea.sflag [#allocation6], %s307
        %s309 = sand.u32 %s204, 1
        %s310 = smul.addr %s309, 16
        %s311 = scalar_lea.vmem [#allocation7], %s310
        %p312 = scmp.lt.s32.totalorder %s23, 1
        %s313 = scalar_select %p312, %s23, 1
        %s314 = smul.addr %s313, 2
        %s315 = smul.addr %s314, 8
        %s316 = scalar_lea.vmem %s0, %s315
        %v317 = vld [vmem:[%s7] ss:$4 sm:$0x3]
        %s318 = scalar_lea.vmem %s7, 2
        %v319 = vld [vmem:[%s318] ss:$4 sm:$0x3]
        %v320 = vld [vmem:[%s316] sm:$0xff]
        %v321 = vld [vmem:[%s316 + $0x8] sm:$0xff]
        %322 = vst [vmem:[#allocation2] sm:$0xff] 0.0
        %323 = vst [vmem:[#allocation2 + $0x18] sm:$0xff] 0.0
        %324 = vst [vmem:[#allocation3] sm:$0xff] 0.0
        %325 = vst [vmem:[#allocation3 + $0x18] sm:$0xff] 0.0
        %326 = vst [vmem:[#allocation2 + $0x8] sm:$0xff] %v320
        %327 = vst [vmem:[#allocation2 + $0x10] sm:$0xff] %v321
        %v328 = vld [vmem:[#allocation4] sm:$0xff]
        %v329 = vld [vmem:[#allocation2] sm:$0xff]
        %v330 = vld [vmem:[#allocation2 + $0x8] sm:$0xff]
        %v331 = vld [vmem:[#allocation2 + $0x10] sm:$0xff]
        %v333 = vlaneseq
        %v334 = vshrl.u32 %v333, 7
        %v335 = vsub.s32 0, %v334
        %v336 = vrot.slane %v317, %v335
        %v337 = vlaneseq
        %v338 = vshrl.u32 %v337, 7
        %v339 = vsub.s32 1, %v338
        %v340 = vrot.slane %v317, %v339
        %341 = vrot.lane.b32.xlu0 %v336, 111
        %v342 = vpop.permute.xlu0 %341
        %343 = vrot.lane.b32.xlu0 %v340, 111
        %v344 = vpop.permute.xlu0 %343
        %vm345 = vcmask 908288
        %v346 = vsel %vm345, %v342, %v344
        %v350 = vmul.f32 %v329, %v342
        %v351 = vmul.f32 %v330, %v346
        %v352 = vmul.f32 %v331, %v344
        %v354 = vlaneseq
        %v355 = vshrl.u32 %v354, 7
        %v356 = vsub.s32 0, %v355
        %v357 = vrot.slane %v319, %v356
        %v358 = vlaneseq
        %v359 = vshrl.u32 %v358, 7
        %v360 = vsub.s32 1, %v359
        %v361 = vrot.slane %v319, %v360
        %362 = vrot.lane.b32.xlu0 %v357, 113
        %v363 = vpop.permute.xlu0 %362
        %364 = vrot.lane.b32.xlu0 %v361, 113
        %v365 = vpop.permute.xlu0 %364
        %vm366 = vcmask 924672
        %v367 = vsel %vm366, %v363, %v365
        %v371 = vmul.f32 %v329, %v363
        %v372 = vmul.f32 %v330, %v367
        %v373 = vmul.f32 %v331, %v365
        %374 = vrot.lane.b32.xlu0 %v336, 127
        %v375 = vpop.permute.xlu0 %374
        %376 = vrot.lane.b32.xlu0 %v340, 127
        %v377 = vpop.permute.xlu0 %376
        %vm378 = vcmask 1039360
        %v379 = vsel %vm378, %v375, %v377
        %v383 = vmul.f32 %v329, %v375
        %v384 = vmul.f32 %v330, %v379
        %v385 = vmul.f32 %v331, %v377
        %v386 = vld [vmem:[#allocation2 + $0x8] sm:$0xff]
        %v387 = vld [vmem:[#allocation2 + $0x10] sm:$0xff]
        %v388 = vld [vmem:[#allocation2 + $0x18] sm:$0xff]
        %389 = vrot.lane.b32.xlu0 %v357, 1
        %v390 = vpop.permute.xlu0 %389
        %391 = vrot.lane.b32.xlu0 %v361, 1
        %v392 = vpop.permute.xlu0 %391
        %vm393 = vcmask 7168
        %v394 = vsel %vm393, %v390, %v392
        %v398 = vmul.f32 %v386, %v390
        %v399 = vmul.f32 %v387, %v394
        %v400 = vmul.f32 %v388, %v392
        %401 = vrot.lane.b32.xlu0 %v336, 15
        %v402 = vpop.permute.xlu0 %401
        %403 = vrot.lane.b32.xlu0 %v340, 15
        %v404 = vpop.permute.xlu0 %403
        %vm405 = vcmask 121856
        %v406 = vsel %vm405, %v402, %v404
        %v410 = vmul.f32 %v386, %v402
        %v411 = vmul.f32 %v387, %v406
        %v412 = vmul.f32 %v388, %v404
        %413 = vrot.lane.b32.xlu0 %v357, 17
        %v414 = vpop.permute.xlu0 %413
        %415 = vrot.lane.b32.xlu0 %v361, 17
        %v416 = vpop.permute.xlu0 %415
        %vm417 = vcmask 138240
        %v418 = vsel %vm417, %v414, %v416
        %v422 = vmul.f32 %v386, %v414
        %v423 = vmul.f32 %v387, %v418
        %v424 = vmul.f32 %v388, %v416
        %428 = vrot.lane.b32.xlu0 %v329, 127
        %v429 = vpop.permute.xlu0 %428
        %430 = vrot.lane.b32.xlu0 %v330, 127
        %v431 = vpop.permute.xlu0 %430
        %432 = vrot.lane.b32.xlu0 %v331, 127
        %v433 = vpop.permute.xlu0 %432
        %v434 = vsel %vm378, %v429, %v431
        %v435 = vsel %vm378, %v431, %v433
        %439 = vrot.lane.b32.xlu0 %v371, 126
        %v440 = vpop.permute.xlu0 %439
        %441 = vrot.lane.b32.xlu0 %v372, 126
        %v442 = vpop.permute.xlu0 %441
        %443 = vrot.lane.b32.xlu0 %v373, 126
        %v444 = vpop.permute.xlu0 %443
        %vm445 = vcmask 1031168
        %v446 = vsel %vm445, %v440, %v442
        %v447 = vsel %vm445, %v442, %v444
        %451 = vrot.lane.b32.xlu0 %v383, 112
        %v452 = vpop.permute.xlu0 %451
        %453 = vrot.lane.b32.xlu0 %v384, 112
        %v454 = vpop.permute.xlu0 %453
        %455 = vrot.lane.b32.xlu0 %v385, 112
        %v456 = vpop.permute.xlu0 %455
        %vm457 = vcmask 916480
        %v458 = vsel %vm457, %v452, %v454
        %v459 = vsel %vm457, %v454, %v456
        %460 = vrot.lane.b32.xlu0 %v330, 111
        %v461 = vpop.permute.xlu0 %460
        %462 = vrot.lane.b32.xlu0 %v331, 111
        %v463 = vpop.permute.xlu0 %462
        %v464 = vsel %vm345, %v461, %v463
        %468 = vrot.lane.b32.xlu0 %v398, 110
        %v469 = vpop.permute.xlu0 %468
        %470 = vrot.lane.b32.xlu0 %v399, 110
        %v471 = vpop.permute.xlu0 %470
        %472 = vrot.lane.b32.xlu0 %v400, 110
        %v473 = vpop.permute.xlu0 %472
        %vm474 = vcmask 900096
        %v475 = vsel %vm474, %v469, %v471
        %v476 = vsel %vm474, %v471, %v473
        %480 = vrot.lane.b32.xlu0 %v410, 96
        %v481 = vpop.permute.xlu0 %480
        %482 = vrot.lane.b32.xlu0 %v411, 96
        %v483 = vpop.permute.xlu0 %482
        %484 = vrot.lane.b32.xlu0 %v412, 96
        %v485 = vpop.permute.xlu0 %484
        %vm486 = vcmask 785408
        %v487 = vsel %vm486, %v481, %v483
        %v488 = vsel %vm486, %v483, %v485
        %492 = vrot.lane.b32.xlu0 %v386, 95
        %v493 = vpop.permute.xlu0 %492
        %494 = vrot.lane.b32.xlu0 %v387, 95
        %v495 = vpop.permute.xlu0 %494
        %496 = vrot.lane.b32.xlu0 %v388, 95
        %v497 = vpop.permute.xlu0 %496
        %vm498 = vcmask 777216
        %v499 = vsel %vm498, %v493, %v495
        %v500 = vsel %vm498, %v495, %v497
        %504 = vrot.lane.b32.xlu0 %v422, 94
        %v505 = vpop.permute.xlu0 %504
        %506 = vrot.lane.b32.xlu0 %v423, 94
        %v507 = vpop.permute.xlu0 %506
        %508 = vrot.lane.b32.xlu0 %v424, 94
        %v509 = vpop.permute.xlu0 %508
        %vm510 = vcmask 769024
        %v511 = vsel %vm510, %v505, %v507
        %v512 = vsel %vm510, %v507, %v509
        %516 = vrot.lane.b32.xlu0 %v350, 17
        %v517 = vpop.permute.xlu0 %516
        %518 = vrot.lane.b32.xlu0 %v351, 17
        %v519 = vpop.permute.xlu0 %518
        %520 = vrot.lane.b32.xlu0 %v352, 17
        %v521 = vpop.permute.xlu0 %520
        %522 = vrot.lane.b32.xlu0 %v434, 17
        %v523 = vpop.permute.xlu0 %522
        %524 = vrot.lane.b32.xlu0 %v435, 17
        %v525 = vpop.permute.xlu0 %524
        %526 = vrot.lane.b32.xlu0 %v433, 17
        %v527 = vpop.permute.xlu0 %526
        %528 = vrot.lane.b32.xlu0 %v446, 17
        %v529 = vpop.permute.xlu0 %528
        %530 = vrot.lane.b32.xlu0 %v447, 17
        %v531 = vpop.permute.xlu0 %530
        %532 = vrot.lane.b32.xlu0 %v444, 17
        %v533 = vpop.permute.xlu0 %532
        %534 = vrot.lane.b32.xlu0 %v458, 17
        %v535 = vpop.permute.xlu0 %534
        %536 = vrot.lane.b32.xlu0 %v459, 17
        %v537 = vpop.permute.xlu0 %536
        %538 = vrot.lane.b32.xlu0 %v456, 17
        %v539 = vpop.permute.xlu0 %538
        %540 = vrot.lane.b32.xlu0 %v461, 17
        %v541 = vpop.permute.xlu0 %540
        %542 = vrot.lane.b32.xlu0 %v464, 17
        %v543 = vpop.permute.xlu0 %542
        %544 = vrot.lane.b32.xlu0 %v463, 17
        %v545 = vpop.permute.xlu0 %544
        %546 = vrot.lane.b32.xlu0 %v469, 17
        %v547 = vpop.permute.xlu0 %546
        %548 = vrot.lane.b32.xlu0 %v475, 17
        %v549 = vpop.permute.xlu0 %548
        %550 = vrot.lane.b32.xlu0 %v476, 17
        %v551 = vpop.permute.xlu0 %550
        %552 = vrot.lane.b32.xlu0 %v481, 17
        %v553 = vpop.permute.xlu0 %552
        %554 = vrot.lane.b32.xlu0 %v487, 17
        %v555 = vpop.permute.xlu0 %554
        %556 = vrot.lane.b32.xlu0 %v488, 17
        %v557 = vpop.permute.xlu0 %556
        %558 = vrot.lane.b32.xlu0 %v493, 17
        %v559 = vpop.permute.xlu0 %558
        %560 = vrot.lane.b32.xlu0 %v499, 17
        %v561 = vpop.permute.xlu0 %560
        %562 = vrot.lane.b32.xlu0 %v500, 17
        %v563 = vpop.permute.xlu0 %562
        %564 = vrot.lane.b32.xlu0 %v505, 17
        %v565 = vpop.permute.xlu0 %564
        %566 = vrot.lane.b32.xlu0 %v511, 17
        %v567 = vpop.permute.xlu0 %566
        %568 = vrot.lane.b32.xlu0 %v512, 17
        %v569 = vpop.permute.xlu0 %568
        %v570 = vsel %vm417, %v517, %v519
        %v571 = vsel %vm417, %v519, %v521
        %v572 = vsel %vm417, %v523, %v525
        %v573 = vsel %vm417, %v525, %v527
        %v574 = vsel %vm417, %v529, %v531
        %v575 = vsel %vm417, %v531, %v533
        %v576 = vsel %vm417, %v535, %v537
        %v577 = vsel %vm417, %v537, %v539
        %v578 = vsel %vm417, %v541, %v543
        %v579 = vsel %vm417, %v543, %v545
        %v580 = vsel %vm417, %v547, %v549
        %v581 = vsel %vm417, %v549, %v551
        %v582 = vsel %vm417, %v553, %v555
        %v583 = vsel %vm417, %v555, %v557
        %v584 = vsel %vm417, %v559, %v561
        %v585 = vsel %vm417, %v561, %v563
        %v586 = vsel %vm417, %v565, %v567
        %v587 = vsel %vm417, %v567, %v569
        %vm606 = vcmask 588800
        %v608 = vsel %vm606, %v328, 0
        %610 = vmatprep.subr.mxu0 %v571
        %611 = vmatpush1.msra.mxu0 %v570
        %612 = vmatprep.subr.mxu0 %v573
        %613 = vmatpush1.msra.mxu0 %v572
        %614 = vmatprep.subr.mxu0 %v575
        %615 = vmatpush1.msra.mxu0 %v574
        %616 = vmatprep.subr.mxu0 %v577
        %617 = vmatpush1.msra.mxu0 %v576
        %618 = vmatprep.subr.mxu0 %v579
        %619 = vmatpush1.msra.mxu0 %v578
        %620 = vmatprep.subr.mxu0 %v581
        %621 = vmatpush1.msra.mxu0 %v580
        %622 = vmatprep.subr.mxu0 %v583
        %623 = vmatpush1.msra.mxu0 %v582
        %624 = vmatprep.subr.mxu0 %v585
        %625 = vmatpush1.msra.mxu0 %v584
        %626 = vmatprep.subr.mxu0 %v587
        %627 = vmatpush1.msra.mxu0 %v586
        %628 = vmatprep.subr.mxu0 0.0
        %629 = vmatpush1.msra.mxu0 0.0
        %630 = vmatprep.subr.mxu0 0.0
        %631 = vmatpush1.msra.mxu0 0.0
        %632 = vmatprep.subr.mxu0 0.0
        %633 = vmatpush1.msra.mxu0 0.0
        %634 = vmatprep.subr.mxu0 0.0
        %635 = vmatpush1.msra.mxu0 0.0
        %636 = vmatprep.subr.mxu0 0.0
        %637 = vmatpush1.msra.mxu0 0.0
        %638 = vmatprep.subr.mxu0 0.0
        %639 = vmatpush1.msra.mxu0 0.0
        %640 = vmatprep.subr.mxu0 0.0
        %641 = vmatpush1.msra.mxu0 0.0
        %642 = vmatprep.subr.mxu0 0.0
        %643 = vmatpush1.msra.mxu0 0.0
        %644 = vmatprep.subr.mxu0 0.0
        %645 = vmatpush1.msra.mxu0 0.0
        %646 = vmatprep.subr.mxu0 0.0
        %647 = vmatpush1.msra.mxu0 0.0
        %648 = vmatprep.subr.mxu0 0.0
        %649 = vmatpush1.msra.mxu0 0.0
        %650 = vmatprep.subr.mxu0 0.0
        %651 = vmatpush1.msra.mxu0 0.0
        %652 = vmatprep.subr.mxu0 0.0
        %653 = vmatpush1.msra.mxu0 0.0
        %654 = vmatprep.subr.mxu0 0.0
        %655 = vmatpush1.msra.mxu0 0.0
        %656 = vmatprep.subr.mxu0 0.0
        %657 = vmatpush1.msra.mxu0 0.0
        %658 = vmatprep.subr.mxu0 0.0
        %659 = vmatpush1.msra.mxu0 0.0
        %660 = vmatprep.subr.mxu0 0.0
        %661 = vmatpush1.msra.mxu0 0.0
        %662 = vmatprep.subr.mxu0 0.0
        %663 = vmatpush1.msra.mxu0 0.0
        %664 = vmatprep.subr.mxu0 0.0
        %665 = vmatpush1.msra.mxu0 0.0
        %666 = vmatprep.subr.mxu0 0.0
        %667 = vmatpush1.msra.mxu0 0.0
        %668 = vmatprep.subr.mxu0 0.0
        %669 = vmatpush1.msra.mxu0 0.0
        %670 = vmatprep.subr.mxu0 0.0
        %671 = vmatpush1.msra.mxu0 0.0
        %672 = vmatprep.subr.mxu0 0.0
        %673 = vmatpush1.msra.mxu0 0.0
        %674 = vmatprep.mubr.f32.mxu0 0.0
        %675 = vmatmul.mubr.f32.gmra.mrb[0].mxu0 %v608
        %v676 = vpop.f32.mrb[0].mxu0
        %v677 = vadd.f32 0.0, %v676
        %v678 = vpop.f32.mrb[0].mxu0
        %v679 = vadd.f32 0.0, %v678
        %680 = vdwg.mxu0
        %v681 = vld [vmem:[%s2] sm:$0xff]
        %683 = vset.pattern.permute.xlu0 0
        %684 = vperm.xlu0 %683, %v681
        %v685 = vpop.permute.xlu0 %684
        %v687 = vmul.f32 %v677, %v685
        %v688 = vmul.f32 %v679, %v685
        %v689 = vld [vmem:[%s3] sm:$0xff]
        %691 = vset.pattern.permute.xlu0 0
        %692 = vperm.xlu0 %691, %v689
        %v693 = vpop.permute.xlu0 %692
        %v695 = vadd.f32 %v687, %v693
        %v696 = vadd.f32 %v688, %v693
        %v697 = vmax.f32 %v695, 0.0
        %v698 = vmax.f32 %v696, 0.0
        %699 = vst [vmem:[#allocation3 + $0x8] sm:$0xff] %v697
        %700 = vst [vmem:[#allocation3 + $0x10] sm:$0xff] %v698
        %v701 = vld [vmem:[%s4] sm:$0xff]
        %v702 = vld [vmem:[#allocation3] sm:$0xff]
        %v703 = vld [vmem:[#allocation3 + $0x8] sm:$0xff]
        %v704 = vld [vmem:[#allocation3 + $0x10] sm:$0xff]
        %v705 = vmul.f32 %v702, %v342
        %v706 = vmul.f32 %v703, %v346
        %v707 = vmul.f32 %v704, %v344
        %v708 = vmul.f32 %v702, %v363
        %v709 = vmul.f32 %v703, %v367
        %v710 = vmul.f32 %v704, %v365
        %v711 = vmul.f32 %v702, %v375
        %v712 = vmul.f32 %v703, %v379
        %v713 = vmul.f32 %v704, %v377
        %v714 = vld [vmem:[#allocation3 + $0x8] sm:$0xff]
        %v715 = vld [vmem:[#allocation3 + $0x10] sm:$0xff]
        %v716 = vld [vmem:[#allocation3 + $0x18] sm:$0xff]
        %v717 = vmul.f32 %v714, %v390
        %v718 = vmul.f32 %v715, %v394
        %v719 = vmul.f32 %v716, %v392
        %v720 = vmul.f32 %v714, %v402
        %v721 = vmul.f32 %v715, %v406
        %v722 = vmul.f32 %v716, %v404
        %v723 = vmul.f32 %v714, %v414
        %v724 = vmul.f32 %v715, %v418
        %v725 = vmul.f32 %v716, %v416
        %729 = vrot.lane.b32.xlu0 %v702, 127
        %v730 = vpop.permute.xlu0 %729
        %731 = vrot.lane.b32.xlu0 %v703, 127
        %v732 = vpop.permute.xlu0 %731
        %733 = vrot.lane.b32.xlu0 %v704, 127
        %v734 = vpop.permute.xlu0 %733
        %v735 = vsel %vm378, %v730, %v732
        %v736 = vsel %vm378, %v732, %v734
        %740 = vrot.lane.b32.xlu0 %v708, 126
        %v741 = vpop.permute.xlu0 %740
        %742 = vrot.lane.b32.xlu0 %v709, 126
        %v743 = vpop.permute.xlu0 %742
        %744 = vrot.lane.b32.xlu0 %v710, 126
        %v745 = vpop.permute.xlu0 %744
        %v746 = vsel %vm445, %v741, %v743
        %v747 = vsel %vm445, %v743, %v745
        %751 = vrot.lane.b32.xlu0 %v711, 112
        %v752 = vpop.permute.xlu0 %751
        %753 = vrot.lane.b32.xlu0 %v712, 112
        %v754 = vpop.permute.xlu0 %753
        %755 = vrot.lane.b32.xlu0 %v713, 112
        %v756 = vpop.permute.xlu0 %755
        %v757 = vsel %vm457, %v752, %v754
        %v758 = vsel %vm457, %v754, %v756
        %759 = vrot.lane.b32.xlu0 %v703, 111
        %v760 = vpop.permute.xlu0 %759
        %761 = vrot.lane.b32.xlu0 %v704, 111
        %v762 = vpop.permute.xlu0 %761
        %v763 = vsel %vm345, %v760, %v762
        %767 = vrot.lane.b32.xlu0 %v717, 110
        %v768 = vpop.permute.xlu0 %767
        %769 = vrot.lane.b32.xlu0 %v718, 110
        %v770 = vpop.permute.xlu0 %769
        %771 = vrot.lane.b32.xlu0 %v719, 110
        %v772 = vpop.permute.xlu0 %771
        %v773 = vsel %vm474, %v768, %v770
        %v774 = vsel %vm474, %v770, %v772
        %778 = vrot.lane.b32.xlu0 %v720, 96
        %v779 = vpop.permute.xlu0 %778
        %780 = vrot.lane.b32.xlu0 %v721, 96
        %v781 = vpop.permute.xlu0 %780
        %782 = vrot.lane.b32.xlu0 %v722, 96
        %v783 = vpop.permute.xlu0 %782
        %v784 = vsel %vm486, %v779, %v781
        %v785 = vsel %vm486, %v781, %v783
        %789 = vrot.lane.b32.xlu0 %v714, 95
        %v790 = vpop.permute.xlu0 %789
        %791 = vrot.lane.b32.xlu0 %v715, 95
        %v792 = vpop.permute.xlu0 %791
        %793 = vrot.lane.b32.xlu0 %v716, 95
        %v794 = vpop.permute.xlu0 %793
        %v795 = vsel %vm498, %v790, %v792
        %v796 = vsel %vm498, %v792, %v794
        %800 = vrot.lane.b32.xlu0 %v723, 94
        %v801 = vpop.permute.xlu0 %800
        %802 = vrot.lane.b32.xlu0 %v724, 94
        %v803 = vpop.permute.xlu0 %802
        %804 = vrot.lane.b32.xlu0 %v725, 94
        %v805 = vpop.permute.xlu0 %804
        %v806 = vsel %vm510, %v801, %v803
        %v807 = vsel %vm510, %v803, %v805
        %811 = vrot.lane.b32.xlu0 %v705, 17
        %v812 = vpop.permute.xlu0 %811
        %813 = vrot.lane.b32.xlu0 %v706, 17
        %v814 = vpop.permute.xlu0 %813
        %815 = vrot.lane.b32.xlu0 %v707, 17
        %v816 = vpop.permute.xlu0 %815
        %817 = vrot.lane.b32.xlu0 %v735, 17
        %v818 = vpop.permute.xlu0 %817
        %819 = vrot.lane.b32.xlu0 %v736, 17
        %v820 = vpop.permute.xlu0 %819
        %821 = vrot.lane.b32.xlu0 %v734, 17
        %v822 = vpop.permute.xlu0 %821
        %823 = vrot.lane.b32.xlu0 %v746, 17
        %v824 = vpop.permute.xlu0 %823
        %825 = vrot.lane.b32.xlu0 %v747, 17
        %v826 = vpop.permute.xlu0 %825
        %827 = vrot.lane.b32.xlu0 %v745, 17
        %v828 = vpop.permute.xlu0 %827
        %829 = vrot.lane.b32.xlu0 %v757, 17
        %v830 = vpop.permute.xlu0 %829
        %831 = vrot.lane.b32.xlu0 %v758, 17
        %v832 = vpop.permute.xlu0 %831
        %833 = vrot.lane.b32.xlu0 %v756, 17
        %v834 = vpop.permute.xlu0 %833
        %835 = vrot.lane.b32.xlu0 %v760, 17
        %v836 = vpop.permute.xlu0 %835
        %837 = vrot.lane.b32.xlu0 %v763, 17
        %v838 = vpop.permute.xlu0 %837
        %839 = vrot.lane.b32.xlu0 %v762, 17
        %v840 = vpop.permute.xlu0 %839
        %841 = vrot.lane.b32.xlu0 %v768, 17
        %v842 = vpop.permute.xlu0 %841
        %843 = vrot.lane.b32.xlu0 %v773, 17
        %v844 = vpop.permute.xlu0 %843
        %845 = vrot.lane.b32.xlu0 %v774, 17
        %v846 = vpop.permute.xlu0 %845
        %847 = vrot.lane.b32.xlu0 %v779, 17
        %v848 = vpop.permute.xlu0 %847
        %849 = vrot.lane.b32.xlu0 %v784, 17
        %v850 = vpop.permute.xlu0 %849
        %851 = vrot.lane.b32.xlu0 %v785, 17
        %v852 = vpop.permute.xlu0 %851
        %853 = vrot.lane.b32.xlu0 %v790, 17
        %v854 = vpop.permute.xlu0 %853
        %855 = vrot.lane.b32.xlu0 %v795, 17
        %v856 = vpop.permute.xlu0 %855
        %857 = vrot.lane.b32.xlu0 %v796, 17
        %v858 = vpop.permute.xlu0 %857
        %859 = vrot.lane.b32.xlu0 %v801, 17
        %v860 = vpop.permute.xlu0 %859
        %861 = vrot.lane.b32.xlu0 %v806, 17
        %v862 = vpop.permute.xlu0 %861
        %863 = vrot.lane.b32.xlu0 %v807, 17
        %v864 = vpop.permute.xlu0 %863
        %v865 = vsel %vm417, %v812, %v814
        %v866 = vsel %vm417, %v814, %v816
        %v867 = vsel %vm417, %v818, %v820
        %v868 = vsel %vm417, %v820, %v822
        %v869 = vsel %vm417, %v824, %v826
        %v870 = vsel %vm417, %v826, %v828
        %v871 = vsel %vm417, %v830, %v832
        %v872 = vsel %vm417, %v832, %v834
        %v873 = vsel %vm417, %v836, %v838
        %v874 = vsel %vm417, %v838, %v840
        %v875 = vsel %vm417, %v842, %v844
        %v876 = vsel %vm417, %v844, %v846
        %v877 = vsel %vm417, %v848, %v850
        %v878 = vsel %vm417, %v850, %v852
        %v879 = vsel %vm417, %v854, %v856
        %v880 = vsel %vm417, %v856, %v858
        %v881 = vsel %vm417, %v860, %v862
        %v882 = vsel %vm417, %v862, %v864
        %v902 = vsel %vm606, %v701, 0
        %904 = vmatprep.subr.mxu0 %v866
        %905 = vmatpush1.msra.mxu0 %v865
        %906 = vmatprep.subr.mxu0 %v868
        %907 = vmatpush1.msra.mxu0 %v867
        %908 = vmatprep.subr.mxu0 %v870
        %909 = vmatpush1.msra.mxu0 %v869
        %910 = vmatprep.subr.mxu0 %v872
        %911 = vmatpush1.msra.mxu0 %v871
        %912 = vmatprep.subr.mxu0 %v874
        %913 = vmatpush1.msra.mxu0 %v873
        %914 = vmatprep.subr.mxu0 %v876
        %915 = vmatpush1.msra.mxu0 %v875
        %916 = vmatprep.subr.mxu0 %v878
        %917 = vmatpush1.msra.mxu0 %v877
        %918 = vmatprep.subr.mxu0 %v880
        %919 = vmatpush1.msra.mxu0 %v879
        %920 = vmatprep.subr.mxu0 %v882
        %921 = vmatpush1.msra.mxu0 %v881
        %922 = vmatprep.subr.mxu0 0.0
        %923 = vmatpush1.msra.mxu0 0.0
        %924 = vmatprep.subr.mxu0 0.0
        %925 = vmatpush1.msra.mxu0 0.0
        %926 = vmatprep.subr.mxu0 0.0
        %927 = vmatpush1.msra.mxu0 0.0
        %928 = vmatprep.subr.mxu0 0.0
        %929 = vmatpush1.msra.mxu0 0.0
        %930 = vmatprep.subr.mxu0 0.0
        %931 = vmatpush1.msra.mxu0 0.0
        %932 = vmatprep.subr.mxu0 0.0
        %933 = vmatpush1.msra.mxu0 0.0
        %934 = vmatprep.subr.mxu0 0.0
        %935 = vmatpush1.msra.mxu0 0.0
        %936 = vmatprep.subr.mxu0 0.0
        %937 = vmatpush1.msra.mxu0 0.0
        %938 = vmatprep.subr.mxu0 0.0
        %939 = vmatpush1.msra.mxu0 0.0
        %940 = vmatprep.subr.mxu0 0.0
        %941 = vmatpush1.msra.mxu0 0.0
        %942 = vmatprep.subr.mxu0 0.0
        %943 = vmatpush1.msra.mxu0 0.0
        %944 = vmatprep.subr.mxu0 0.0
        %945 = vmatpush1.msra.mxu0 0.0
        %946 = vmatprep.subr.mxu0 0.0
        %947 = vmatpush1.msra.mxu0 0.0
        %948 = vmatprep.subr.mxu0 0.0
        %949 = vmatpush1.msra.mxu0 0.0
        %950 = vmatprep.subr.mxu0 0.0
        %951 = vmatpush1.msra.mxu0 0.0
        %952 = vmatprep.subr.mxu0 0.0
        %953 = vmatpush1.msra.mxu0 0.0
        %954 = vmatprep.subr.mxu0 0.0
        %955 = vmatpush1.msra.mxu0 0.0
        %956 = vmatprep.subr.mxu0 0.0
        %957 = vmatpush1.msra.mxu0 0.0
        %958 = vmatprep.subr.mxu0 0.0
        %959 = vmatpush1.msra.mxu0 0.0
        %960 = vmatprep.subr.mxu0 0.0
        %961 = vmatpush1.msra.mxu0 0.0
        %962 = vmatprep.subr.mxu0 0.0
        %963 = vmatpush1.msra.mxu0 0.0
        %964 = vmatprep.subr.mxu0 0.0
        %965 = vmatpush1.msra.mxu0 0.0
        %966 = vmatprep.subr.mxu0 0.0
        %967 = vmatpush1.msra.mxu0 0.0
        %968 = vmatprep.mubr.f32.mxu0 0.0
        %969 = vmatmul.mubr.f32.gmra.mrb[0].mxu0 %v902
        %v970 = vpop.f32.mrb[0].mxu0
        %v971 = vadd.f32 0.0, %v970
        %v972 = vpop.f32.mrb[0].mxu0
        %v973 = vadd.f32 0.0, %v972
        %974 = vdwg.mxu0
        %v975 = vld [vmem:[%s5] sm:$0xff]
        %977 = vset.pattern.permute.xlu0 0
        %978 = vperm.xlu0 %977, %v975
        %v979 = vpop.permute.xlu0 %978
        %v981 = vmul.f32 %v971, %v979
        %v982 = vmul.f32 %v973, %v979
        %v983 = vld [vmem:[%s6] sm:$0xff]
        %985 = vset.pattern.permute.xlu0 0
        %986 = vperm.xlu0 %985, %v983
        %v987 = vpop.permute.xlu0 %986
        %v989 = vadd.f32 %v981, %v987
        %v990 = vadd.f32 %v982, %v987
        %v991 = vmax.f32 %v989, 0.0
        %v992 = vmax.f32 %v990, 0.0
        %v993 = vadd.f32 %v991, %v320
        %v994 = vadd.f32 %v992, %v321
        %v995 = vmax.f32 %v993, 0.0
        %v996 = vmax.f32 %v994, 0.0
        %997 = vst [vmem:[%s311] sm:$0xff] %v995
        %998 = vst [vmem:[%s311 + $0x8] sm:$0xff] %v996
        %s999 = sand.u32 %s204, 1
        %s1000 = scalar_lea.sflag [#allocation6], %s999
        %s1001 = sand.u32 %s204, 1
        %s1002 = smul.addr %s1001, 16
        %s1003 = scalar_lea.vmem [#allocation7], %s1002
        // Predicated region
        $region57: #{tpu_custom_call.1} parent=51 // pred_check
          %p1004 = pneg %p214
        $region58: #{tpu_custom_call.1} parent=51 // pred_check_branch
          %1006 = sbr.rel (%p1004) target = $region60
        $region59: #{tpu_custom_call.1} parent=51 // pred_region
          %s1008 = ssub.s32 256, 256
          %1009 = vsyncadd %s1000, %s1008
          %s1010 = smul.addr %s23, 2
          %s1011 = smul.addr %s1010, 128
          %s1012 = scalar_lea.hbm %s8, %s1011
          %s1014 = sshll.u32 %s1003, 4
          %s1015 = int_to_ptr.vmem [resolvable:$true] %s1014
          %1017 = dma.vmem_to_hbm [thread:$0]  %s1015, 256, %s1012, %s1000
        $region60: #{tpu_custom_call.1} parent=51 // pred_fallthru
          _
      $region52: #{tpu_custom_call.1} parent=5 // pred_fallthru
        _
      %p1018 = scmp.le.s32.totalorder 2, %s18
      // Predicated region
      $region61: #{tpu_custom_call.1} parent=5 // pred_check
        %p1019 = pneg %p1018
      $region62: #{tpu_custom_call.1} parent=5 // pred_check_branch
        %1021 = sbr.rel (%p1019) target = $region64
      $region63: #{tpu_custom_call.1} parent=5 // pred_region
        %s1022 = ssub.s32 %s18, 2
        // Predicated region
        $region65: #{tpu_custom_call.1} parent=63 // pred_check
          %p1023 = pneg %p220
        $region66: #{tpu_custom_call.1} parent=63 // pred_check_branch
          %1025 = sbr.rel (%p1023) target = $region68
        $region67: #{tpu_custom_call.1} parent=63 // pred_region
          %s1026 = sand.u32 %s205, 1
          %s1027 = scalar_lea.sflag [#allocation6], %s1026
          %s1028 = sand.u32 %s205, 1
          %s1029 = smul.addr %s1028, 16
          %s1030 = scalar_lea.vmem [#allocation7], %s1029
          %1031 = dma.done %s1027, 256
        $region68: #{tpu_custom_call.1} parent=63 // pred_fallthru
          _
      $region64: #{tpu_custom_call.1} parent=5 // pred_fallthru
        _
    $region6: #{tpu_custom_call.1} parent=1 // loop_footer
      %s22 = sadd.s32 1, %s18
    $region7: #{tpu_custom_call.1} parent=1 // loop_footer_branch
      %17 = sbr.rel target = $region3
    $region8: #{tpu_custom_call.1} parent=1 // loop_exit
      _
    %1032 = vsyncpa [#allocation5], 1
    %s1033 = scalar_lea.sflag [#allocation5], 1
    %1034 = vsyncpa %s1033, 1
    %1035 = vsyncpa [#allocation6], 1
    %s1036 = scalar_lea.sflag [#allocation6], 1
    %1037 = vsyncpa %s1036, 1

</llo_original>
